<compile_context>
chip_gen: v7x
topology: tpu7x:2x2x1
jax: 0.10.0
libtpu: 0.0.40
codegen_flags: <defaults>
</compile_context>

<pallas_src>
import jax
import jax.numpy as jnp
from jax.experimental import pallas as pl
from jax.experimental.pallas import tpu as pltpu

RELEVANCE_THRESHOLD = 3  # module __init__ default

# Bernoulli thresholds in the 16-bit uniform domain (u ~ Uniform{0..65535}),
# click iff u <= thr:
#   p = 1.0 -> thr = 65535  (always clicks)
#   p = 0.1 -> thr = 6553   (6554/65536 ~= 0.10001)
_THR_HIGH = 65535
_THR_LOW = 6553


def click_sampler_kernel(obs_ref, rank_ref, rand_ref, out_ref):
    # Zero-extend the 16-bit uniform draw to i32 so the compare is a plain
    # 32-bit VPU op on all chip generations.
    u = rand_ref[...].astype(jnp.int32)
    # click_probabilities: 1.0 everywhere, 0.1 where rankings < threshold,
    # expressed directly as an integer threshold (works for i8 or i32 rankings).
    thr = jnp.where(rank_ref[...] < RELEVANCE_THRESHOLD,
                    jnp.int32(_THR_LOW), jnp.int32(_THR_HIGH))
    # Fused bernoulli(click_prob) * observation_scores — no f32 click_logs temp.
    out_ref[...] = jnp.where(u <= thr, obs_ref[...], jnp.float32(0.0))


def _pick_tile(dim, unit, cap):
    """Largest multiple of `unit` that divides `dim` and is <= cap; else full dim.

    A full-extent block is always legal regardless of (8,128) divisibility.
    """
    if dim <= cap:
        return dim
    t = (cap // unit) * unit
    while t >= unit:
        if dim % t == 0:
            return t
        t -= unit
    return dim


def click_sampler(observation_scores, rankings, key, *, max_block_elems=256 * 1024):
    """observation_scores: f32[B, N], rankings: int[B, N] (i32 or i8) -> f32[B, N]."""
    B, N = observation_scores.shape
    assert rankings.shape == (B, N)

    # Host-side uniform draw (2 bytes/element).  See TODO(synk) above.
    rand_u16 = jax.random.bits(key, (B, N), dtype=jnp.uint16)

    # Large, lane-dense tiles; capped so obs(4) + rank(<=4) + rand(2) + out(4)
    # double-buffered stays ~7 MiB << scoped VMEM default on v5e/v6e/v7x.
    tn = _pick_tile(N, 128, min(N, 2048))
    tm = _pick_tile(B, 16, max(16, max_block_elems // tn))
    grid = (B // tm, N // tn)

    return pl.pallas_call(
        click_sampler_kernel,
        out_shape=jax.ShapeDtypeStruct((B, N), observation_scores.dtype),
        grid=grid,
        in_specs=[
            pl.BlockSpec((tm, tn), lambda i, j: (i, j)),  # observation_scores
            pl.BlockSpec((tm, tn), lambda i, j: (i, j)),  # rankings
            pl.BlockSpec((tm, tn), lambda i, j: (i, j)),  # uniform u16 bits
        ],
        out_specs=pl.BlockSpec((tm, tn), lambda i, j: (i, j)),
        compiler_params=pltpu.CompilerParams(
            dimension_semantics=("parallel", "parallel")),
    )(observation_scores, rankings, rand_u16)


if __name__ == "__main__":
    key = jax.random.PRNGKey(0)
    k_obs, k_rank, k_bits = jax.random.split(key, 3)

    B, N = 16, 256  # (batch of queries, docs per ranking list)
    observation_scores = jax.random.uniform(k_obs, (B, N), dtype=jnp.float32)
    rankings = jax.random.randint(k_rank, (B, N), 0, 5).astype(jnp.int32)

    out = click_sampler(observation_scores, rankings, k_bits)
    out = jax.block_until_ready(out)

    # Sanity: output is observation_scores masked by {0,1} clicks; high-relevance
    # docs (rank >= threshold, p = 1.0) are always clicked.
    assert out.shape == (B, N) and out.dtype == jnp.float32
    high = rankings >= RELEVANCE_THRESHOLD
    assert bool(jnp.all(jnp.where(high, out == observation_scores, True)))
    # Low-relevance docs (p = 0.1): either dropped (0) or passed through exactly.
    low_ok = (out == 0.0) | (out == observation_scores)
    assert bool(jnp.all(jnp.where(~high, low_ok, True)))

    print("KERNEL_OK")
</pallas_src>

<mosaic_0001>
module attributes {stable_mosaic.version = 11 : i64} {
  func.func @click_sampler_kernel(%arg0: i32, %arg1: i32, %arg2: memref<16x256xf32, #tpu.memory_space<vmem>>, %arg3: memref<16x256xi32, #tpu.memory_space<vmem>>, %arg4: memref<16x256xi16, #tpu.memory_space<vmem>>, %arg5: memref<16x256xf32, #tpu.memory_space<vmem>>) attributes {dimension_semantics = [#tpu.dimension_semantics<parallel>, #tpu.dimension_semantics<parallel>], iteration_bounds = array<i64: 1, 1>, scalar_prefetch = 0 : i64, scratch_operands = 0 : i64, tpu.core_type = #tpu.core_type<tc>, window_params = [{transform_indices = @transform_0, window_bounds = array<i64: 16, 256>}, {transform_indices = @transform_1, window_bounds = array<i64: 16, 256>}, {transform_indices = @transform_2, window_bounds = array<i64: 16, 256>}, {transform_indices = @transform_3, window_bounds = array<i64: 16, 256>}]} {
    %c0 = arith.constant 0 : index
    %c0_0 = arith.constant 0 : index
    %0 = vector.load %arg4[%c0, %c0_0] : memref<16x256xi16, #tpu.memory_space<vmem>>, vector<16x256xi16>
    %1 = arith.extui %0 : vector<16x256xi16> to vector<16x256xi32>
    %c0_1 = arith.constant 0 : index
    %c0_2 = arith.constant 0 : index
    %2 = vector.load %arg3[%c0_1, %c0_2] : memref<16x256xi32, #tpu.memory_space<vmem>>, vector<16x256xi32>
    %c3_i32 = arith.constant 3 : i32
    %3 = vector.broadcast %c3_i32 : i32 to vector<16x256xi32>
    %4 = arith.cmpi slt, %2, %3 : vector<16x256xi32>
    %c6553_i32 = arith.constant 6553 : i32
    %c65535_i32 = arith.constant 65535 : i32
    %5 = vector.broadcast %c6553_i32 : i32 to vector<16x256xi32>
    %6 = vector.broadcast %c65535_i32 : i32 to vector<16x256xi32>
    %7 = arith.select %4, %5, %6 : vector<16x256xi1>, vector<16x256xi32>
    %8 = arith.cmpi sle, %1, %7 : vector<16x256xi32>
    %c0_3 = arith.constant 0 : index
    %c0_4 = arith.constant 0 : index
    %9 = vector.load %arg2[%c0_3, %c0_4] : memref<16x256xf32, #tpu.memory_space<vmem>>, vector<16x256xf32>
    %cst = arith.constant 0.000000e+00 : f32
    %10 = vector.broadcast %cst : f32 to vector<16x256xf32>
    %11 = arith.select %8, %9, %10 : vector<16x256xi1>, vector<16x256xf32>
    %c0_5 = arith.constant 0 : index
    %c0_6 = arith.constant 0 : index
    %12 = vector.load %arg5[%c0_5, %c0_6] : memref<16x256xf32, #tpu.memory_space<vmem>>, vector<16x256xf32>
    tpu.vector_store %arg5[%c0_5, %c0_6], %11 {strides = array<i32>} : memref<16x256xf32, #tpu.memory_space<vmem>>, vector<16x256xf32>,
    return
  }
  func.func @transform_0(%arg0: i32, %arg1: i32) -> (i32, i32) {
    %c0_i32 = arith.constant 0 : i32
    return %arg0, %arg1 : i32, i32
  }
  func.func @transform_1(%arg0: i32, %arg1: i32) -> (i32, i32) {
    %c0_i32 = arith.constant 0 : i32
    return %arg0, %arg1 : i32, i32
  }
  func.func @transform_2(%arg0: i32, %arg1: i32) -> (i32, i32) {
    %c0_i32 = arith.constant 0 : i32
    return %arg0, %arg1 : i32, i32
  }
  func.func @transform_3(%arg0: i32, %arg1: i32) -> (i32, i32) {
    %c0_i32 = arith.constant 0 : i32
    return %arg0, %arg1 : i32, i32
  }
}

</mosaic_0001>

<llo_original>
// kernel: tpu_custom_call.1
$region0: #{tpu_custom_call.1}
  #allocation0 [shape = 'u32[]', space=smem, size = 0x4, offset = 0x4, fixed_abs, tag = 'smem constant byte address 0x4 - core index']
  #allocation1 [shape = 'u32[144,128]{1,0:T(1,128)}', space=vmem, size = 0x12000, scoped, tag = 'internal scratch']
  %s0 = inlined_call_operand.hbm [shape: f32[16,256], index: 0, kind: input, shape index: {}]
  %s1 = inlined_call_operand.hbm [shape: s32[16,256], index: 1, kind: input, shape index: {}]
  %s2 = inlined_call_operand.hbm [shape: u16[16,256], index: 2, kind: input, shape index: {}]
  %s3 = inlined_call_operand.hbm [shape: f32[16,256], index: 3, kind: output, shape index: {}]
  %s4 = sld [smem:[#allocation0]]
  $region34: #{tpu_custom_call.1} parent=0
    _
  %s6 = ssub.s32 1, %s4
  %s7 = scalar_select 0, %s6, %s4
  $region1: #{tpu_custom_call.1} parent=0
    #allocation2 [shape = 'u8[16384]{0}', space=vmem, size = 0x4000, scoped, tag = 'input window, operand 0, single buffered']
    #allocation3 [shape = 's32[1]{0}', space=sflag, size = 0x4, scoped, tag = 'scoped memory for tpu_custom_call.1']
    #allocation4 [shape = 's32[1]{0}', space=sflag, size = 0x4, scoped, tag = 'scoped memory for tpu_custom_call.1']
    #allocation5 [shape = 'u8[16384]{0}', space=vmem, size = 0x4000, scoped, tag = 'input window, operand 1, single buffered']
    #allocation6 [shape = 's32[1]{0}', space=sflag, size = 0x4, scoped, tag = 'scoped memory for tpu_custom_call.1']
    #allocation7 [shape = 'u8[8192]{0}', space=vmem, size = 0x2000, scoped, tag = 'input window, operand 2, single buffered']
    #allocation8 [shape = 'u8[16384]{0}', space=vmem, size = 0x4000, scoped, tag = 'output window, operand 0, single buffered']
    %8 = vsyncpa [#allocation3], 0
    %9 = vsyncpa [#allocation6], 0
    %10 = vsyncpa [#allocation4], 0
    // Predicated region
    $region2: #{tpu_custom_call.1} parent=1 // pred_check
      _
    $region3: #{tpu_custom_call.1} parent=1 // pred_check_branch
      %12 = sbr.rel (0) target = $region5
    $region4: #{tpu_custom_call.1} parent=1 // pred_region
      %s14 = ssub.s32 512, 512
      %15 = vsyncadd [#allocation3], %s14
      %s16 = sshll.u32 [#allocation2], 4
      %s17 = int_to_ptr.vmem [resolvable:$true] %s16
      %22 = dma.hbm_to_vmem [thread:$0]  %s0, 512, %s17, [#allocation3], 256, 256, 16
    $region5: #{tpu_custom_call.1} parent=1 // pred_fallthru
      _
    // Predicated region
    $region6: #{tpu_custom_call.1} parent=1 // pred_check
      _
    $region7: #{tpu_custom_call.1} parent=1 // pred_check_branch
      %24 = sbr.rel (0) target = $region9
    $region8: #{tpu_custom_call.1} parent=1 // pred_region
      %s26 = ssub.s32 512, 512
      %27 = vsyncadd [#allocation6], %s26
      %s28 = sshll.u32 [#allocation5], 4
      %s29 = int_to_ptr.vmem [resolvable:$true] %s28
      %34 = dma.hbm_to_vmem [thread:$0]  %s1, 512, %s29, [#allocation6], 256, 256, 16
    $region9: #{tpu_custom_call.1} parent=1 // pred_fallthru
      _
    // Predicated region
    $region10: #{tpu_custom_call.1} parent=1 // pred_check
      _
    $region11: #{tpu_custom_call.1} parent=1 // pred_check_branch
      %36 = sbr.rel (0) target = $region13
    $region12: #{tpu_custom_call.1} parent=1 // pred_region
      %s38 = ssub.s32 256, 256
      %39 = vsyncadd [#allocation6], %s38
      %s40 = sshll.u32 [#allocation7], 4
      %s41 = int_to_ptr.vmem [resolvable:$true] %s40
      %46 = dma.hbm_to_vmem [thread:$0]  %s2, 256, %s41, [#allocation6], 128, 128, 8
    $region13: #{tpu_custom_call.1} parent=1 // pred_fallthru
      _
    // Predicated region
    $region14: #{tpu_custom_call.1} parent=1 // pred_check
      _
    $region15: #{tpu_custom_call.1} parent=1 // pred_check_branch
      %48 = sbr.rel (0) target = $region17
    $region16: #{tpu_custom_call.1} parent=1 // pred_region
      %49 = dma.done [#allocation3], 512
    $region17: #{tpu_custom_call.1} parent=1 // pred_fallthru
      _
    // Predicated region
    $region18: #{tpu_custom_call.1} parent=1 // pred_check
      _
    $region19: #{tpu_custom_call.1} parent=1 // pred_check_branch
      %51 = sbr.rel (0) target = $region21
    $region20: #{tpu_custom_call.1} parent=1 // pred_region
      %52 = dma.done [#allocation6], 512
    $region21: #{tpu_custom_call.1} parent=1 // pred_fallthru
      _
    // Predicated region
    $region22: #{tpu_custom_call.1} parent=1 // pred_check
      _
    $region23: #{tpu_custom_call.1} parent=1 // pred_check_branch
      %54 = sbr.rel (0) target = $region25
    $region24: #{tpu_custom_call.1} parent=1 // pred_region
      %55 = dma.done [#allocation6], 256
    $region25: #{tpu_custom_call.1} parent=1 // pred_fallthru
      _
    %v56 = vld [vmem:[#allocation7] sm:$0xff]
    %v57 = vld [vmem:[#allocation7 + $0x8] sm:$0xff]
    %v58 = vunpack.c.l.b16 %v56
    %v59 = vunpack.c.h.b16 %v56
    %v60 = vunpack.c.l.b16 %v57
    %v61 = vunpack.c.h.b16 %v57
    %v62 = vand.u32 %v58, 65535
    %v63 = vand.u32 %v59, 65535
    %v64 = vand.u32 %v60, 65535
    %v65 = vand.u32 %v61, 65535
    %v66 = vld [vmem:[#allocation5] sm:$0xff]
    %v67 = vld [vmem:[#allocation5 + $0x8] sm:$0xff]
    %v68 = vld [vmem:[#allocation5 + $0x10] sm:$0xff]
    %v69 = vld [vmem:[#allocation5 + $0x18] sm:$0xff]
    %vm70 = vcmp.lt.s32.totalorder %v66, 3
    %vm71 = vcmp.lt.s32.totalorder %v67, 3
    %vm72 = vcmp.lt.s32.totalorder %v68, 3
    %vm73 = vcmp.lt.s32.totalorder %v69, 3
    %v74 = vsel %vm70, 6553, 65535
    %v75 = vsel %vm71, 6553, 65535
    %v76 = vsel %vm72, 6553, 65535
    %v77 = vsel %vm73, 6553, 65535
    %vm78 = vcmp.le.s32.totalorder %v62, %v74
    %vm79 = vcmp.le.s32.totalorder %v63, %v75
    %vm80 = vcmp.le.s32.totalorder %v64, %v76
    %vm81 = vcmp.le.s32.totalorder %v65, %v77
    %v82 = vld [vmem:[#allocation2] sm:$0xff]
    %v83 = vld [vmem:[#allocation2 + $0x8] sm:$0xff]
    %v84 = vld [vmem:[#allocation2 + $0x10] sm:$0xff]
    %v85 = vld [vmem:[#allocation2 + $0x18] sm:$0xff]
    %v86 = vsel %vm78, %v82, 0.0
    %v87 = vsel %vm79, %v83, 0.0
    %v88 = vsel %vm80, %v84, 0.0
    %v89 = vsel %vm81, %v85, 0.0
    %90 = vst [vmem:[#allocation8] sm:$0xff] %v86
    %91 = vst [vmem:[#allocation8 + $0x8] sm:$0xff] %v87
    %92 = vst [vmem:[#allocation8 + $0x10] sm:$0xff] %v88
    %93 = vst [vmem:[#allocation8 + $0x18] sm:$0xff] %v89
    // Predicated region
    $region26: #{tpu_custom_call.1} parent=1 // pred_check
      _
    $region27: #{tpu_custom_call.1} parent=1 // pred_check_branch
      %95 = sbr.rel (0) target = $region29
    $region28: #{tpu_custom_call.1} parent=1 // pred_region
      %s97 = ssub.s32 512, 512
      %98 = vsyncadd [#allocation4], %s97
      %s99 = sshll.u32 [#allocation8], 4
      %s100 = int_to_ptr.vmem [resolvable:$true] %s99
      %105 = dma.vmem_to_hbm [thread:$0]  %s100, 512, %s3, [#allocation4], 256, 256, 16
    $region29: #{tpu_custom_call.1} parent=1 // pred_fallthru
      _
    // Predicated region
    $region30: #{tpu_custom_call.1} parent=1 // pred_check
      _
    $region31: #{tpu_custom_call.1} parent=1 // pred_check_branch
      %107 = sbr.rel (0) target = $region33
    $region32: #{tpu_custom_call.1} parent=1 // pred_region
      %108 = dma.done [#allocation4], 512
    $region33: #{tpu_custom_call.1} parent=1 // pred_fallthru
      _
    %109 = vsyncpa [#allocation3], 1
    %110 = vsyncpa [#allocation6], 1
    %111 = vsyncpa [#allocation4], 1

</llo_original>
